<compile_context>
chip_gen: v7x
topology: tpu7x:2x2x1
jax: 0.10.0
libtpu: 0.0.40
codegen_flags: <defaults>
</compile_context>

<pallas_src>
import functools

import jax
import jax.numpy as jnp
from jax.experimental import pallas as pl
from jax.experimental.pallas import tpu as pltpu

LANE = 128  # TPU vreg lane width; output last dim padded to a multiple of this for unmasked stores.


def mlp_kernel(x_ref, w1a_ref, w2a_ref, o_ref):
    """Fused single-hidden-layer MLP forward with softmax over the batch axis.

    x_ref   : [B, IN]          activations
    w1a_ref : [IN+1, HID+1]    W1.T with b1 folded in as the last row; the extra last column is
                               (zero weights, bias = 1) so h gains a ones column that carries b2.
    w2a_ref : [HID+1, O_pad]   W2.T (lane-padded) with b2 folded in as the last row.
    o_ref   : [B, O_pad]       softmax(logits, dim=0).
    """
    x = x_ref[...]
    in_features = x.shape[1]

    # Layer 1: relu(x @ W1.T + b1). Static ref slices are zero-cost views; b1 lives inside w1a.
    w1t = w1a_ref[:in_features, :]                          # [IN, HID+1]
    b1_row = w1a_ref[in_features:in_features + 1, :]        # [1,  HID+1]  (last entry == 1.0)
    h = jnp.maximum(
        jnp.dot(x, w1t, preferred_element_type=jnp.float32) + b1_row, 0.0
    )                                                       # [B, HID+1]; h[:, -1] == 1 exactly

    # Layer 2: logits = h @ W2.T + b2 (b2 applied via the ones column x last row of w2a).
    logits = jnp.dot(h, w2a_ref[...], preferred_element_type=jnp.float32)  # [B, O_pad]

    # Softmax over dim=0 (batch axis), faithful to F.softmax(x, dim=0) in the reference.
    m = jnp.max(logits, axis=0, keepdims=True)
    e = jnp.exp(logits - m)
    denom = jnp.sum(e, axis=0, keepdims=True)
    o_ref[...] = e / denom                                  # exact normalization


def prepare_mlp_params(w1, b1, w2, b2):
    """ONE-TIME layout prep (hoisted out of the per-call path).

    w1: [HID, IN], b1: [HID], w2: [O, HID], b2: [O]  (torch nn.Linear layout)
    Returns:
      w1a: [IN+1, HID+1]  pre-transposed W1 with b1 as last row and a (0-weights, bias=1) column.
      w2a: [HID+1, O_pad] pre-transposed, lane-padded W2 with b2 as last row.
    """
    hid, in_features = w1.shape
    out_features = w2.shape[0]
    o_pad = max(-(-out_features // LANE) * LANE, LANE)

    w1a = jnp.zeros((in_features + 1, hid + 1), jnp.float32)
    w1a = w1a.at[:in_features, :hid].set(w1.T)
    w1a = w1a.at[in_features, :hid].set(b1.reshape(hid))
    w1a = w1a.at[in_features, hid].set(1.0)  # generates the ones column in h (relu(0 + 1) == 1)

    w2a = jnp.zeros((hid + 1, o_pad), jnp.float32)
    w2a = w2a.at[:hid, :out_features].set(w2.T)
    w2a = w2a.at[hid, :out_features].set(b2.reshape(out_features))
    return w1a, w2a


@functools.partial(jax.jit, static_argnames=("out_features",))
def mlp_forward(x, w1a, w2a, out_features):
    """Per-call path: only the pallas_call plus the final pad-column slice."""
    b = x.shape[0]
    o_pad = w2a.shape[1]
    out_padded = pl.pallas_call(
        mlp_kernel,
        out_shape=jax.ShapeDtypeStruct((b, o_pad), jnp.float32),
        in_specs=[
            pl.BlockSpec(memory_space=pltpu.MemorySpace.VMEM),  # x
            pl.BlockSpec(memory_space=pltpu.MemorySpace.VMEM),  # w1a (W1.T + b1 folded)
            pl.BlockSpec(memory_space=pltpu.MemorySpace.VMEM),  # w2a (W2.T + b2 folded, lane-padded)
        ],
        out_specs=pl.BlockSpec(memory_space=pltpu.MemorySpace.VMEM),
    )(x, w1a, w2a)
    # Padded columns carry zero weight/bias -> uniform 1/B softmax values; softmax(dim=0) is
    # per-column, so slicing them off exactly recovers the reference output.
    return out_padded[:, :out_features]


def reference_forward(x, w1, b1, w2, b2):
    hp = jax.lax.Precision.HIGHEST
    h = jnp.maximum(jnp.dot(x, w1.T, precision=hp) + b1, 0.0)
    logits = jnp.dot(h, w2.T, precision=hp) + b2
    return jax.nn.softmax(logits, axis=0)


if __name__ == "__main__":
    # Small shapes consistent with the module: MLP(input_size=16, output_size=8, hidden_layers=[32])
    B, IN, HID, OUT = 2, 16, 32, 8

    key = jax.random.PRNGKey(0)
    kx, k1, kb1, k2, kb2 = jax.random.split(key, 5)

    x = jax.random.normal(kx, (B, IN), dtype=jnp.float32)

    # Deterministic parameter init (torch.nn.Linear-style uniform bounds), synthetic weights.
    bound1 = 1.0 / (IN ** 0.5)
    w1 = jax.random.uniform(k1, (HID, IN), jnp.float32, -bound1, bound1)
    b1 = jax.random.uniform(kb1, (HID,), jnp.float32, -bound1, bound1)
    bound2 = 1.0 / (HID ** 0.5)
    w2 = jax.random.uniform(k2, (OUT, HID), jnp.float32, -bound2, bound2)
    b2 = jax.random.uniform(kb2, (OUT,), jnp.float32, -bound2, bound2)

    # One-time prep (would be done at parameter-creation time in a real deployment).
    w1a, w2a = prepare_mlp_params(w1, b1, w2, b2)
    w1a, w2a = jax.block_until_ready(w1a), jax.block_until_ready(w2a)

    out = mlp_forward(x, w1a, w2a, OUT)
    out = jax.block_until_ready(out)

    ref = reference_forward(x, w1, b1, w2, b2)
    assert out.shape == (B, OUT)
    assert jnp.allclose(out, ref, atol=1e-5, rtol=1e-5), "Pallas output mismatch vs reference"

    print("KERNEL_OK")
</pallas_src>

<mosaic_0001>
module attributes {stable_mosaic.version = 11 : i64} {
  func.func @mlp_kernel(%arg0: memref<2x16xf32, #tpu.memory_space<vmem>>, %arg1: memref<17x33xf32, #tpu.memory_space<vmem>>, %arg2: memref<33x128xf32, #tpu.memory_space<vmem>>, %arg3: memref<2x128xf32, #tpu.memory_space<vmem>>) attributes {dimension_semantics = [], scalar_prefetch = 0 : i64, scratch_operands = 0 : i64, tpu.core_type = #tpu.core_type<tc>} {
    %c0 = arith.constant 0 : index
    %c0_0 = arith.constant 0 : index
    %0 = vector.load %arg0[%c0, %c0_0] : memref<2x16xf32, #tpu.memory_space<vmem>>, vector<2x16xf32>
    %c0_1 = arith.constant 0 : index
    %c0_2 = arith.constant 0 : index
    %1 = vector.load %arg1[%c0_1, %c0_2] : memref<17x33xf32, #tpu.memory_space<vmem>>, vector<16x33xf32>
    %c16 = arith.constant 16 : index
    %c0_3 = arith.constant 0 : index
    %2 = vector.load %arg1[%c16, %c0_3] : memref<17x33xf32, #tpu.memory_space<vmem>>, vector<1x33xf32>
    %cst = arith.constant dense<0.000000e+00> : vector<2x33xf32>
    %3 = tpu.matmul %0, %1, %cst {dimension_numbers = #tpu.dot_dimension_numbers<[1], [0], [0], [1], [0, 0, 1, 1], [], []>} : vector<2x16xf32>, vector<16x33xf32>, vector<2x33xf32> -> vector<2x33xf32>
    %4 = vector.broadcast %2 : vector<1x33xf32> to vector<2x33xf32>
    %5 = arith.addf %3, %4 : vector<2x33xf32>
    %cst_4 = arith.constant 0.000000e+00 : f32
    %6 = vector.broadcast %cst_4 : f32 to vector<2x33xf32>
    %7 = arith.maximumf %5, %6 : vector<2x33xf32>
    %c0_5 = arith.constant 0 : index
    %c0_6 = arith.constant 0 : index
    %8 = vector.load %arg2[%c0_5, %c0_6] : memref<33x128xf32, #tpu.memory_space<vmem>>, vector<33x128xf32>
    %cst_7 = arith.constant dense<0.000000e+00> : vector<2x128xf32>
    %9 = tpu.matmul %7, %8, %cst_7 {dimension_numbers = #tpu.dot_dimension_numbers<[1], [0], [0], [1], [0, 0, 1, 1], [], []>} : vector<2x33xf32>, vector<33x128xf32>, vector<2x128xf32> -> vector<2x128xf32>
    %cst_8 = arith.constant dense<0xFF800000> : vector<128xf32>
    %10 = vector.multi_reduction <maximumf>, %9, %cst_8 [0] : vector<2x128xf32> to vector<128xf32>
    %11 = vector.shape_cast %10 : vector<128xf32> to vector<1x128xf32>
    %12 = vector.broadcast %11 : vector<1x128xf32> to vector<2x128xf32>
    %13 = arith.subf %9, %12 : vector<2x128xf32>
    %14 = math.exp %13 : vector<2x128xf32>
    %cst_9 = arith.constant dense<0.000000e+00> : vector<128xf32>
    %15 = vector.multi_reduction <add>, %14, %cst_9 [0] : vector<2x128xf32> to vector<128xf32>
    %16 = vector.shape_cast %15 : vector<128xf32> to vector<1x128xf32>
    %17 = vector.broadcast %16 : vector<1x128xf32> to vector<2x128xf32>
    %18 = arith.divf %14, %17 : vector<2x128xf32>
    %c0_10 = arith.constant 0 : index
    %c0_11 = arith.constant 0 : index
    %19 = vector.load %arg3[%c0_10, %c0_11] : memref<2x128xf32, #tpu.memory_space<vmem>>, vector<2x128xf32>
    tpu.vector_store %arg3[%c0_10, %c0_11], %18 {strides = array<i32>} : memref<2x128xf32, #tpu.memory_space<vmem>>, vector<2x128xf32>,
    return
  }
}

</mosaic_0001>

<llo_original>
// kernel: mlp_forward.1
$region0: #{mlp_forward.1}
  #allocation0 [shape = 'u32[]', space=smem, size = 0x4, offset = 0x4, fixed_abs, tag = 'smem constant byte address 0x4 - core index']
  #allocation1 [shape = 'u32[144,128]{1,0:T(1,128)}', space=vmem, size = 0x12000, scoped, tag = 'internal scratch']
  %s0 = inlined_call_operand.hbm [shape: f32[2,16], index: 0, kind: input, shape index: {}]
  %s1 = inlined_call_operand.hbm [shape: f32[17,33], index: 1, kind: input, shape index: {}]
  %s2 = inlined_call_operand.hbm [shape: f32[33,128], index: 2, kind: input, shape index: {}]
  %s3 = inlined_call_operand.hbm [shape: f32[2,128], index: 3, kind: output, shape index: {}]
  %s4 = sld [smem:[#allocation0]]
  $region34: #{mlp_forward.1} parent=0
    _
  %s6 = ssub.s32 1, %s4
  %s7 = scalar_select 0, %s6, %s4
  $region1: #{mlp_forward.1} parent=0
    #allocation2 [shape = 'u8[1024]{0}', space=vmem, size = 0x400, scoped, tag = 'input window, operand 0, single buffered']
    #allocation3 [shape = 's32[1]{0}', space=sflag, size = 0x4, scoped, tag = 'scoped memory for mlp_forward.1']
    #allocation4 [shape = 's32[1]{0}', space=sflag, size = 0x4, scoped, tag = 'scoped memory for mlp_forward.1']
    #allocation5 [shape = 'u8[12288]{0}', space=vmem, size = 0x3000, scoped, tag = 'input window, operand 1, single buffered']
    #allocation6 [shape = 's32[1]{0}', space=sflag, size = 0x4, scoped, tag = 'scoped memory for mlp_forward.1']
    #allocation7 [shape = 'u8[20480]{0}', space=vmem, size = 0x5000, scoped, tag = 'input window, operand 2, single buffered']
    #allocation8 [shape = 'u8[1024]{0}', space=vmem, size = 0x400, scoped, tag = 'output window, operand 0, single buffered']
    %8 = vsyncpa [#allocation3], 0
    %9 = vsyncpa [#allocation6], 0
    %10 = vsyncpa [#allocation4], 0
    // Predicated region
    $region2: #{mlp_forward.1} parent=1 // pred_check
      _
    $region3: #{mlp_forward.1} parent=1 // pred_check_branch
      %12 = sbr.rel (0) target = $region5
    $region4: #{mlp_forward.1} parent=1 // pred_region
      %s14 = ssub.s32 32, 32
      %15 = vsyncadd [#allocation3], %s14
      %s17 = sshll.u32 [#allocation2], 4
      %s18 = int_to_ptr.vmem [resolvable:$true] %s17
      %20 = dma.hbm_to_vmem [thread:$0]  %s0, 32, %s18, [#allocation3]
    $region5: #{mlp_forward.1} parent=1 // pred_fallthru
      _
    // Predicated region
    $region6: #{mlp_forward.1} parent=1 // pred_check
      _
    $region7: #{mlp_forward.1} parent=1 // pred_check_branch
      %22 = sbr.rel (0) target = $region9
    $region8: #{mlp_forward.1} parent=1 // pred_region
      %s24 = ssub.s32 384, 384
      %25 = vsyncadd [#allocation6], %s24
      %s26 = sshll.u32 [#allocation5], 4
      %s27 = int_to_ptr.vmem [resolvable:$true] %s26
      %32 = dma.hbm_to_vmem [thread:$0]  %s1, 384, %s27, [#allocation6], 128, 128, 8
    $region9: #{mlp_forward.1} parent=1 // pred_fallthru
      _
    // Predicated region
    $region10: #{mlp_forward.1} parent=1 // pred_check
      _
    $region11: #{mlp_forward.1} parent=1 // pred_check_branch
      %34 = sbr.rel (0) target = $region13
    $region12: #{mlp_forward.1} parent=1 // pred_region
      %s36 = ssub.s32 640, 640
      %37 = vsyncadd [#allocation6], %s36
      %s38 = sshll.u32 [#allocation7], 4
      %s39 = int_to_ptr.vmem [resolvable:$true] %s38
      %44 = dma.hbm_to_vmem [thread:$0]  %s2, 640, %s39, [#allocation6], 128, 128, 8
    $region13: #{mlp_forward.1} parent=1 // pred_fallthru
      _
    // Predicated region
    $region14: #{mlp_forward.1} parent=1 // pred_check
      _
    $region15: #{mlp_forward.1} parent=1 // pred_check_branch
      %46 = sbr.rel (0) target = $region17
    $region16: #{mlp_forward.1} parent=1 // pred_region
      %47 = dma.done [#allocation3], 32
    $region17: #{mlp_forward.1} parent=1 // pred_fallthru
      _
    // Predicated region
    $region18: #{mlp_forward.1} parent=1 // pred_check
      _
    $region19: #{mlp_forward.1} parent=1 // pred_check_branch
      %49 = sbr.rel (0) target = $region21
    $region20: #{mlp_forward.1} parent=1 // pred_region
      %50 = dma.done [#allocation6], 384
    $region21: #{mlp_forward.1} parent=1 // pred_fallthru
      _
    // Predicated region
    $region22: #{mlp_forward.1} parent=1 // pred_check
      _
    $region23: #{mlp_forward.1} parent=1 // pred_check_branch
      %52 = sbr.rel (0) target = $region25
    $region24: #{mlp_forward.1} parent=1 // pred_region
      %53 = dma.done [#allocation6], 640
    $region25: #{mlp_forward.1} parent=1 // pred_fallthru
      _
    %v54 = vld [vmem:[#allocation2] sm:$0x3]
    %v55 = vld [vmem:[#allocation5] sm:$0xff]
    %v56 = vld [vmem:[#allocation5 + $0x8] sm:$0xff]
    %v57 = vld [vmem:[#allocation5 + $0x10] sm:$0x1]
    %v58 = vlaneseq
    %v59 = vshrl.u32 %v58, 7
    %v60 = vsub.s32 0, %v59
    %v61 = vrot.slane %v57, %v60
    %vm62 = vcmask 130048
    %v64 = vsel %vm62, %v54, 0
    %66 = vmatprep.subr.mxu0 0.0
    %67 = vmatpush1.msra.mxu0 %v55
    %68 = vmatprep.subr.mxu0 0.0
    %69 = vmatpush1.msra.mxu0 %v56
    %70 = vmatprep.subr.mxu0 0.0
    %71 = vmatpush1.msra.mxu0 0.0
    %72 = vmatprep.subr.mxu0 0.0
    %73 = vmatpush1.msra.mxu0 0.0
    %74 = vmatprep.subr.mxu0 0.0
    %75 = vmatpush1.msra.mxu0 0.0
    %76 = vmatprep.subr.mxu0 0.0
    %77 = vmatpush1.msra.mxu0 0.0
    %78 = vmatprep.subr.mxu0 0.0
    %79 = vmatpush1.msra.mxu0 0.0
    %80 = vmatprep.subr.mxu0 0.0
    %81 = vmatpush1.msra.mxu0 0.0
    %82 = vmatprep.subr.mxu0 0.0
    %83 = vmatpush1.msra.mxu0 0.0
    %84 = vmatprep.subr.mxu0 0.0
    %85 = vmatpush1.msra.mxu0 0.0
    %86 = vmatprep.subr.mxu0 0.0
    %87 = vmatpush1.msra.mxu0 0.0
    %88 = vmatprep.subr.mxu0 0.0
    %89 = vmatpush1.msra.mxu0 0.0
    %90 = vmatprep.subr.mxu0 0.0
    %91 = vmatpush1.msra.mxu0 0.0
    %92 = vmatprep.subr.mxu0 0.0
    %93 = vmatpush1.msra.mxu0 0.0
    %94 = vmatprep.subr.mxu0 0.0
    %95 = vmatpush1.msra.mxu0 0.0
    %96 = vmatprep.subr.mxu0 0.0
    %97 = vmatpush1.msra.mxu0 0.0
    %98 = vmatprep.subr.mxu0 0.0
    %99 = vmatpush1.msra.mxu0 0.0
    %100 = vmatprep.subr.mxu0 0.0
    %101 = vmatpush1.msra.mxu0 0.0
    %102 = vmatprep.subr.mxu0 0.0
    %103 = vmatpush1.msra.mxu0 0.0
    %104 = vmatprep.subr.mxu0 0.0
    %105 = vmatpush1.msra.mxu0 0.0
    %106 = vmatprep.subr.mxu0 0.0
    %107 = vmatpush1.msra.mxu0 0.0
    %108 = vmatprep.subr.mxu0 0.0
    %109 = vmatpush1.msra.mxu0 0.0
    %110 = vmatprep.subr.mxu0 0.0
    %111 = vmatpush1.msra.mxu0 0.0
    %112 = vmatprep.subr.mxu0 0.0
    %113 = vmatpush1.msra.mxu0 0.0
    %114 = vmatprep.subr.mxu0 0.0
    %115 = vmatpush1.msra.mxu0 0.0
    %116 = vmatprep.subr.mxu0 0.0
    %117 = vmatpush1.msra.mxu0 0.0
    %118 = vmatprep.subr.mxu0 0.0
    %119 = vmatpush1.msra.mxu0 0.0
    %120 = vmatprep.subr.mxu0 0.0
    %121 = vmatpush1.msra.mxu0 0.0
    %122 = vmatprep.subr.mxu0 0.0
    %123 = vmatpush1.msra.mxu0 0.0
    %124 = vmatprep.subr.mxu0 0.0
    %125 = vmatpush1.msra.mxu0 0.0
    %126 = vmatprep.subr.mxu0 0.0
    %127 = vmatpush1.msra.mxu0 0.0
    %128 = vmatprep.subr.mxu0 0.0
    %129 = vmatpush1.msra.mxu0 0.0
    %130 = vmatprep.mubr.f32.mxu0 0.0
    %131 = vmatmul.mubr.f32.gmra.mrb[0].mxu0 %v64
    %v132 = vpop.f32.mrb[0].mxu0
    %v133 = vadd.f32 %v61, %v132
    %v134 = vpop.f32.mrb[0].mxu0
    %135 = vdwg.mxu0
    %v136 = vmax.f32 %v133, 0.0
    %v137 = vld [vmem:[#allocation7] sm:$0xff]
    %v138 = vld [vmem:[#allocation7 + $0x8] sm:$0xff]
    %v139 = vld [vmem:[#allocation7 + $0x10] sm:$0xff]
    %v140 = vld [vmem:[#allocation7 + $0x18] sm:$0xff]
    %v141 = vld [vmem:[#allocation7 + $0x20] sm:$0x1]
    %vm142 = vcmask 269312
    %v144 = vsel %vm142, %v136, 0
    %vm146 = vcmask 1040384
    %v148 = vsel %vm146, %v141, 0
    %150 = vmatprep.subr.mxu0 0.0
    %151 = vmatpush1.msra.mxu0 %v137
    %152 = vmatprep.subr.mxu0 0.0
    %153 = vmatpush1.msra.mxu0 %v138
    %154 = vmatprep.subr.mxu0 0.0
    %155 = vmatpush1.msra.mxu0 %v139
    %156 = vmatprep.subr.mxu0 0.0
    %157 = vmatpush1.msra.mxu0 %v140
    %158 = vmatprep.subr.mxu0 0.0
    %159 = vmatpush1.msra.mxu0 %v148
    %160 = vmatprep.subr.mxu0 0.0
    %161 = vmatpush1.msra.mxu0 0.0
    %162 = vmatprep.subr.mxu0 0.0
    %163 = vmatpush1.msra.mxu0 0.0
    %164 = vmatprep.subr.mxu0 0.0
    %165 = vmatpush1.msra.mxu0 0.0
    %166 = vmatprep.subr.mxu0 0.0
    %167 = vmatpush1.msra.mxu0 0.0
    %168 = vmatprep.subr.mxu0 0.0
    %169 = vmatpush1.msra.mxu0 0.0
    %170 = vmatprep.subr.mxu0 0.0
    %171 = vmatpush1.msra.mxu0 0.0
    %172 = vmatprep.subr.mxu0 0.0
    %173 = vmatpush1.msra.mxu0 0.0
    %174 = vmatprep.subr.mxu0 0.0
    %175 = vmatpush1.msra.mxu0 0.0
    %176 = vmatprep.subr.mxu0 0.0
    %177 = vmatpush1.msra.mxu0 0.0
    %178 = vmatprep.subr.mxu0 0.0
    %179 = vmatpush1.msra.mxu0 0.0
    %180 = vmatprep.subr.mxu0 0.0
    %181 = vmatpush1.msra.mxu0 0.0
    %182 = vmatprep.subr.mxu0 0.0
    %183 = vmatpush1.msra.mxu0 0.0
    %184 = vmatprep.subr.mxu0 0.0
    %185 = vmatpush1.msra.mxu0 0.0
    %186 = vmatprep.subr.mxu0 0.0
    %187 = vmatpush1.msra.mxu0 0.0
    %188 = vmatprep.subr.mxu0 0.0
    %189 = vmatpush1.msra.mxu0 0.0
    %190 = vmatprep.subr.mxu0 0.0
    %191 = vmatpush1.msra.mxu0 0.0
    %192 = vmatprep.subr.mxu0 0.0
    %193 = vmatpush1.msra.mxu0 0.0
    %194 = vmatprep.subr.mxu0 0.0
    %195 = vmatpush1.msra.mxu0 0.0
    %196 = vmatprep.subr.mxu0 0.0
    %197 = vmatpush1.msra.mxu0 0.0
    %198 = vmatprep.subr.mxu0 0.0
    %199 = vmatpush1.msra.mxu0 0.0
    %200 = vmatprep.subr.mxu0 0.0
    %201 = vmatpush1.msra.mxu0 0.0
    %202 = vmatprep.subr.mxu0 0.0
    %203 = vmatpush1.msra.mxu0 0.0
    %204 = vmatprep.subr.mxu0 0.0
    %205 = vmatpush1.msra.mxu0 0.0
    %206 = vmatprep.subr.mxu0 0.0
    %207 = vmatpush1.msra.mxu0 0.0
    %208 = vmatprep.subr.mxu0 0.0
    %209 = vmatpush1.msra.mxu0 0.0
    %210 = vmatprep.subr.mxu0 0.0
    %211 = vmatpush1.msra.mxu0 0.0
    %212 = vmatprep.subr.mxu0 0.0
    %213 = vmatpush1.msra.mxu0 0.0
    %214 = vmatprep.mubr.f32.mxu0 0.0
    %215 = vmatmul.mubr.f32.gmra.mrb[0].mxu0 %v144
    %v216 = vpop.f32.mrb[0].mxu0
    %v217 = vadd.f32 0.0, %v216
    %v218 = vpop.f32.mrb[0].mxu0
    %219 = vdwg.mxu0
    %vm220 = vcmask 1041408
    %v221 = vsel %vm220, %v217, -inf
    %v222 = vrot.slane %v221, 4
    %v223 = vmax.f32 %v221, %v222
    %v224 = vrot.slane %v223, 2
    %v225 = vmax.f32 %v223, %v224
    %v226 = vrot.slane %v225, 1
    %v227 = vmax.f32 %v225, %v226
    %v228 = vsub.f32 %v217, %v227
    %v229 = vmul.f32 %v228, 1.442695
    %v230 = vpow.pop %v229
    %v231 = vsel %vm220, %v230, 0.0
    %v232 = vrot.slane %v231, 4
    %v233 = vadd.f32 %v231, %v232
    %v234 = vrot.slane %v233, 2
    %v235 = vadd.f32 %v233, %v234
    %v236 = vrot.slane %v235, 1
    %v237 = vadd.f32 %v235, %v236
    %v238 = vrcp.pop %v237
    %v239 = vmul.f32 %v230, %v238
    %240 = vst [vmem:[#allocation8] sm:$0x3] %v239
    // Predicated region
    $region26: #{mlp_forward.1} parent=1 // pred_check
      _
    $region27: #{mlp_forward.1} parent=1 // pred_check_branch
      %242 = sbr.rel (0) target = $region29
    $region28: #{mlp_forward.1} parent=1 // pred_region
      %s244 = ssub.s32 32, 32
      %245 = vsyncadd [#allocation4], %s244
      %s247 = sshll.u32 [#allocation8], 4
      %s248 = int_to_ptr.vmem [resolvable:$true] %s247
      %250 = dma.vmem_to_hbm [thread:$0]  %s248, 32, %s3, [#allocation4]
    $region29: #{mlp_forward.1} parent=1 // pred_fallthru
      _
    // Predicated region
    $region30: #{mlp_forward.1} parent=1 // pred_check
      _
    $region31: #{mlp_forward.1} parent=1 // pred_check_branch
      %252 = sbr.rel (0) target = $region33
    $region32: #{mlp_forward.1} parent=1 // pred_region
      %253 = dma.done [#allocation4], 32
    $region33: #{mlp_forward.1} parent=1 // pred_fallthru
      _
    %254 = vsyncpa [#allocation3], 1
    %255 = vsyncpa [#allocation6], 1
    %256 = vsyncpa [#allocation4], 1

</llo_original>
